<compile_context>
chip_gen: v5e
topology: v5e:2x2
jax: 0.10.0
libtpu: 0.0.40
codegen_flags: <defaults>
</compile_context>

<pallas_src>
import jax
import jax.numpy as jnp
from jax import lax
from jax.experimental import pallas as pl
from jax.experimental.pallas import tpu as pltpu


_GROUP = 8   # rows gathered per grid step == one full f32 sublane group
_NBUF = 2    # double-buffered gather staging


def _make_embed_sum_kernel(n_valid: int, group: int, needs_mask: bool):
    """Kernel factory; closes over static index count / tail-mask decision."""

    def kernel(ids_ref, table_ref, out_ref, buf_ref, sem_ref, acc_ref):
        e = pl.program_id(0)            # emb_size tile (outer, independent)
        g = pl.program_id(1)            # index group (reduction, innermost)
        ng = pl.num_programs(1)
        te = out_ref.shape[1]
        col = pl.multiple_of(e * te, te)

        def row_copy(row_idx, slot, j):
            return pltpu.make_async_copy(
                table_ref.at[pl.ds(row_idx, 1), pl.ds(col, te)],  # contiguous (1, te)
                buf_ref.at[slot, pl.ds(j, 1), :],                 # (1, te) in VMEM
                sem_ref.at[slot, j],
            )

        def start_group(grp, slot):
            # Fully unrolled: issues `group` independent row-gather DMAs.
            for j in range(group):
                row_copy(ids_ref[grp * group + j], slot, j).start()

        def wait_group(slot):
            for j in range(group):
                row_copy(0, slot, j).wait()      # row index irrelevant for wait

        # First group of this emb tile: zero the wide accumulator, prime slot 0.
        @pl.when(g == 0)
        def _():
            acc_ref[...] = jnp.zeros_like(acc_ref)
            start_group(0, 0)

        # Prefetch the next group into the other slot before blocking on this one.
        @pl.when(g + 1 < ng)
        def _():
            start_group(g + 1, (g + 1) % _NBUF)

        slot = g % _NBUF
        wait_group(slot)

        contrib = buf_ref[slot].astype(jnp.float32)
        if needs_mask:
            # Last group may be padded with index-0 rows; mask them out.
            row = lax.broadcasted_iota(jnp.int32, (group, 1), 0)
            contrib = jnp.where(row + g * group < n_valid, contrib, 0.0)
        acc_ref[...] += contrib

        # Final group: collapse the 8 sublane partial sums into the output row.
        @pl.when(g == ng - 1)
        def _():
            out_ref[...] = jnp.sum(
                acc_ref[...], axis=0, keepdims=True
            ).astype(out_ref.dtype)

    return kernel


def _pick_e_tile(emb_size: int, max_tile: int = 1024) -> int:
    """Column-tile size for very wide embeddings; whole E when it is small."""
    if emb_size <= max_tile:
        return emb_size
    for cand in (1024, 512, 256, 128):
        if emb_size % cand == 0:
            return cand
    return emb_size


def embed_sum(ix: jax.Array, weight: jax.Array) -> jax.Array:
    """JAX equivalent of EmbedSum.forward(ix)."""
    num_emb, emb_size = weight.shape

    flat = ix.reshape(-1).astype(jnp.int32)          # ix.view(1, -1) flatten
    # Defensive clamp: an out-of-range index would fault the gather DMA
    # (PyTorch's EmbeddingBag raises instead).
    flat = jnp.clip(flat, 0, num_emb - 1)

    n = int(flat.shape[0])
    n_groups = max(1, pl.cdiv(n, _GROUP))
    n_pad = n_groups * _GROUP
    if n_pad != n:                                   # pad with index 0; masked in-kernel
        flat = jnp.pad(flat, (0, n_pad - n))

    te = _pick_e_tile(emb_size)
    n_et = emb_size // te

    needs_mask = (n % _GROUP != 0) or n == 0
    kernel = _make_embed_sum_kernel(n, _GROUP, needs_mask)

    out = pl.pallas_call(
        kernel,
        out_shape=jax.ShapeDtypeStruct((1, emb_size), weight.dtype),
        grid_spec=pltpu.PrefetchScalarGridSpec(
            num_scalar_prefetch=1,                        # flat index array -> SMEM
            grid=(n_et, n_groups),
            in_specs=[pl.BlockSpec(memory_space=pl.ANY)],  # table stays in HBM
            out_specs=pl.BlockSpec((1, te), lambda e, g, ids: (0, e)),
            scratch_shapes=[
                pltpu.VMEM((_NBUF, _GROUP, te), weight.dtype),  # double-buffered gather
                pltpu.SemaphoreType.DMA((_NBUF, _GROUP)),
                pltpu.VMEM((_GROUP, te), jnp.float32),          # vreg-wide accumulator
            ],
        ),
        compiler_params=pltpu.CompilerParams(
            dimension_semantics=("parallel", "arbitrary"),
        ),
    )(flat, weight)

    return out.reshape(-1)                           # .view(-1)


if __name__ == "__main__":
    num_embeddings = 64
    emb_size = 128            # lane-aligned embedding dim
    batch, seq = 2, 9         # 18 indices in one bag -> exercises the tail mask

    key = jax.random.PRNGKey(0)
    k_w, k_ix = jax.random.split(key)

    # nn.EmbeddingBag initializes weight ~ N(0, 1); deterministic init here.
    weight = jax.random.normal(k_w, (num_embeddings, emb_size), dtype=jnp.float32)
    ix = jax.random.randint(k_ix, (batch, seq), 0, num_embeddings, dtype=jnp.int32)

    out = embed_sum(ix, weight)
    out = jax.block_until_ready(out)

    # Reference (plain JAX) == EmbeddingBag(mode='sum') over one flat bag.
    ref = jnp.sum(weight[ix.reshape(-1)], axis=0)
    assert out.shape == (emb_size,)
    assert jnp.allclose(out, ref, atol=1e-5, rtol=1e-5)

    print("KERNEL_OK")
</pallas_src>

<mosaic_0001>
module attributes {stable_mosaic.version = 11 : i64} {
  func.func @kernel(%arg0: i32, %arg1: i32, %arg2: memref<24xi32, #tpu.memory_space<smem>>, %arg3: memref<64x128xf32, #tpu.memory_space<any>>, %arg4: memref<1x128xf32, #tpu.memory_space<vmem>>, %arg5: memref<2x8x128xf32, #tpu.memory_space<vmem>>, %arg6: memref<2x8x!tpu.dma_semaphore, #tpu.memory_space<semaphore_mem>>, %arg7: memref<8x128xf32, #tpu.memory_space<vmem>>) attributes {dimension_semantics = [#tpu.dimension_semantics<parallel>, #tpu.dimension_semantics<arbitrary>], iteration_bounds = array<i64: 1, 3>, scalar_prefetch = 1 : i64, scratch_operands = 3 : i64, tpu.core_type = #tpu.core_type<tc>, window_params = [{}, {transform_indices = @transform_1, window_bounds = array<i64: 1, 128>}]} {
    %c128_i32 = arith.constant 128 : i32
    %0 = arith.muli %arg0, %c128_i32 : i32
    %1 = tpu.assume_multiple %0, 128 : i32
    %c0_i32 = arith.constant 0 : i32
    %2 = arith.cmpi eq, %arg1, %c0_i32 : i32
    %3 = arith.extui %2 : i1 to i32
    %c0_i32_0 = arith.constant 0 : i32
    %4 = arith.cmpi ne, %3, %c0_i32_0 : i32
    scf.if %4 {
      %cst_42 = arith.constant 0.000000e+00 : f32
      %78 = vector.broadcast %cst_42 : f32 to vector<8x128xf32>
      %c0_43 = arith.constant 0 : index
      %c0_44 = arith.constant 0 : index
      %79 = vector.load %arg7[%c0_43, %c0_44] : memref<8x128xf32, #tpu.memory_space<vmem>>, vector<8x128xf32>
      tpu.vector_store %arg7[%c0_43, %c0_44], %78 {strides = array<i32>} : memref<8x128xf32, #tpu.memory_space<vmem>>, vector<8x128xf32>,
      %c0_45 = arith.constant 0 : index
      %80 = memref.load %arg2[%c0_45] : memref<24xi32, #tpu.memory_space<smem>>
      %c0_i32_46 = arith.constant 0 : i32
      %c0_i32_47 = arith.constant 0 : i32
      %c0_i32_48 = arith.constant 0 : i32
      %81 = tpu.memref_slice %arg3[%80, %1] : memref<64x128xf32, #tpu.memory_space<any>> -> memref<1x128xf32, #tpu.memory_space<any>>
      %c0_i32_49 = arith.constant 0 : i32
      %c0_i32_50 = arith.constant 0 : i32
      %82 = tpu.memref_slice %arg5[%c0_i32_46, %c0_i32_49, %c0_i32_50] : memref<2x8x128xf32, #tpu.memory_space<vmem>> -> memref<1x1x128xf32, #tpu.memory_space<vmem>>
      %83 = tpu.memref_squeeze %82 : memref<1x1x128xf32, #tpu.memory_space<vmem>> -> memref<1x128xf32, #tpu.memory_space<vmem>>
      %84 = tpu.memref_slice %arg6[%c0_i32_47, %c0_i32_48] : memref<2x8x!tpu.dma_semaphore, #tpu.memory_space<semaphore_mem>> -> memref<1x1x!tpu.dma_semaphore, #tpu.memory_space<semaphore_mem>>
      %85 = tpu.memref_squeeze %84 : memref<1x1x!tpu.dma_semaphore, #tpu.memory_space<semaphore_mem>> -> memref<!tpu.dma_semaphore, #tpu.memory_space<semaphore_mem>>
      tpu.enqueue_dma source(%81 : memref<1x128xf32, #tpu.memory_space<any>>) target(%83 : memref<1x128xf32, #tpu.memory_space<vmem>>) target_semaphore(%85 : memref<!tpu.dma_semaphore, #tpu.memory_space<semaphore_mem>>)
      %c1 = arith.constant 1 : index
      %86 = memref.load %arg2[%c1] : memref<24xi32, #tpu.memory_space<smem>>
      %c0_i32_51 = arith.constant 0 : i32
      %c0_i32_52 = arith.constant 0 : i32
      %c1_i32_53 = arith.constant 1 : i32
      %87 = tpu.memref_slice %arg3[%86, %1] : memref<64x128xf32, #tpu.memory_space<any>> -> memref<1x128xf32, #tpu.memory_space<any>>
      %c1_i32_54 = arith.constant 1 : i32
      %c0_i32_55 = arith.constant 0 : i32
      %88 = tpu.memref_slice %arg5[%c0_i32_51, %c1_i32_54, %c0_i32_55] : memref<2x8x128xf32, #tpu.memory_space<vmem>> -> memref<1x1x128xf32, #tpu.memory_space<vmem>>
      %89 = tpu.memref_squeeze %88 : memref<1x1x128xf32, #tpu.memory_space<vmem>> -> memref<1x128xf32, #tpu.memory_space<vmem>>
      %90 = tpu.memref_slice %arg6[%c0_i32_52, %c1_i32_53] : memref<2x8x!tpu.dma_semaphore, #tpu.memory_space<semaphore_mem>> -> memref<1x1x!tpu.dma_semaphore, #tpu.memory_space<semaphore_mem>>
      %91 = tpu.memref_squeeze %90 : memref<1x1x!tpu.dma_semaphore, #tpu.memory_space<semaphore_mem>> -> memref<!tpu.dma_semaphore, #tpu.memory_space<semaphore_mem>>
      tpu.enqueue_dma source(%87 : memref<1x128xf32, #tpu.memory_space<any>>) target(%89 : memref<1x128xf32, #tpu.memory_space<vmem>>) target_semaphore(%91 : memref<!tpu.dma_semaphore, #tpu.memory_space<semaphore_mem>>)
      %c2 = arith.constant 2 : index
      %92 = memref.load %arg2[%c2] : memref<24xi32, #tpu.memory_space<smem>>
      %c0_i32_56 = arith.constant 0 : i32
      %c0_i32_57 = arith.constant 0 : i32
      %c2_i32_58 = arith.constant 2 : i32
      %93 = tpu.memref_slice %arg3[%92, %1] : memref<64x128xf32, #tpu.memory_space<any>> -> memref<1x128xf32, #tpu.memory_space<any>>
      %c2_i32_59 = arith.constant 2 : i32
      %c0_i32_60 = arith.constant 0 : i32
      %94 = tpu.memref_slice %arg5[%c0_i32_56, %c2_i32_59, %c0_i32_60] : memref<2x8x128xf32, #tpu.memory_space<vmem>> -> memref<1x1x128xf32, #tpu.memory_space<vmem>>
      %95 = tpu.memref_squeeze %94 : memref<1x1x128xf32, #tpu.memory_space<vmem>> -> memref<1x128xf32, #tpu.memory_space<vmem>>
      %96 = tpu.memref_slice %arg6[%c0_i32_57, %c2_i32_58] : memref<2x8x!tpu.dma_semaphore, #tpu.memory_space<semaphore_mem>> -> memref<1x1x!tpu.dma_semaphore, #tpu.memory_space<semaphore_mem>>
      %97 = tpu.memref_squeeze %96 : memref<1x1x!tpu.dma_semaphore, #tpu.memory_space<semaphore_mem>> -> memref<!tpu.dma_semaphore, #tpu.memory_space<semaphore_mem>>
      tpu.enqueue_dma source(%93 : memref<1x128xf32, #tpu.memory_space<any>>) target(%95 : memref<1x128xf32, #tpu.memory_space<vmem>>) target_semaphore(%97 : memref<!tpu.dma_semaphore, #tpu.memory_space<semaphore_mem>>)
      %c3 = arith.constant 3 : index
      %98 = memref.load %arg2[%c3] : memref<24xi32, #tpu.memory_space<smem>>
      %c0_i32_61 = arith.constant 0 : i32
      %c0_i32_62 = arith.constant 0 : i32
      %c3_i32_63 = arith.constant 3 : i32
      %99 = tpu.memref_slice %arg3[%98, %1] : memref<64x128xf32, #tpu.memory_space<any>> -> memref<1x128xf32, #tpu.memory_space<any>>
      %c3_i32_64 = arith.constant 3 : i32
      %c0_i32_65 = arith.constant 0 : i32
      %100 = tpu.memref_slice %arg5[%c0_i32_61, %c3_i32_64, %c0_i32_65] : memref<2x8x128xf32, #tpu.memory_space<vmem>> -> memref<1x1x128xf32, #tpu.memory_space<vmem>>
      %101 = tpu.memref_squeeze %100 : memref<1x1x128xf32, #tpu.memory_space<vmem>> -> memref<1x128xf32, #tpu.memory_space<vmem>>
      %102 = tpu.memref_slice %arg6[%c0_i32_62, %c3_i32_63] : memref<2x8x!tpu.dma_semaphore, #tpu.memory_space<semaphore_mem>> -> memref<1x1x!tpu.dma_semaphore, #tpu.memory_space<semaphore_mem>>
      %103 = tpu.memref_squeeze %102 : memref<1x1x!tpu.dma_semaphore, #tpu.memory_space<semaphore_mem>> -> memref<!tpu.dma_semaphore, #tpu.memory_space<semaphore_mem>>
      tpu.enqueue_dma source(%99 : memref<1x128xf32, #tpu.memory_space<any>>) target(%101 : memref<1x128xf32, #tpu.memory_space<vmem>>) target_semaphore(%103 : memref<!tpu.dma_semaphore, #tpu.memory_space<semaphore_mem>>)
      %c4 = arith.constant 4 : index
      %104 = memref.load %arg2[%c4] : memref<24xi32, #tpu.memory_space<smem>>
      %c0_i32_66 = arith.constant 0 : i32
      %c0_i32_67 = arith.constant 0 : i32
      %c4_i32_68 = arith.constant 4 : i32
      %105 = tpu.memref_slice %arg3[%104, %1] : memref<64x128xf32, #tpu.memory_space<any>> -> memref<1x128xf32, #tpu.memory_space<any>>
      %c4_i32_69 = arith.constant 4 : i32
      %c0_i32_70 = arith.constant 0 : i32
      %106 = tpu.memref_slice %arg5[%c0_i32_66, %c4_i32_69, %c0_i32_70] : memref<2x8x128xf32, #tpu.memory_space<vmem>> -> memref<1x1x128xf32, #tpu.memory_space<vmem>>
      %107 = tpu.memref_squeeze %106 : memref<1x1x128xf32, #tpu.memory_space<vmem>> -> memref<1x128xf32, #tpu.memory_space<vmem>>
      %108 = tpu.memref_slice %arg6[%c0_i32_67, %c4_i32_68] : memref<2x8x!tpu.dma_semaphore, #tpu.memory_space<semaphore_mem>> -> memref<1x1x!tpu.dma_semaphore, #tpu.memory_space<semaphore_mem>>
      %109 = tpu.memref_squeeze %108 : memref<1x1x!tpu.dma_semaphore, #tpu.memory_space<semaphore_mem>> -> memref<!tpu.dma_semaphore, #tpu.memory_space<semaphore_mem>>
      tpu.enqueue_dma source(%105 : memref<1x128xf32, #tpu.memory_space<any>>) target(%107 : memref<1x128xf32, #tpu.memory_space<vmem>>) target_semaphore(%109 : memref<!tpu.dma_semaphore, #tpu.memory_space<semaphore_mem>>)
      %c5 = arith.constant 5 : index
      %110 = memref.load %arg2[%c5] : memref<24xi32, #tpu.memory_space<smem>>
      %c0_i32_71 = arith.constant 0 : i32
      %c0_i32_72 = arith.constant 0 : i32
      %c5_i32_73 = arith.constant 5 : i32
      %111 = tpu.memref_slice %arg3[%110, %1] : memref<64x128xf32, #tpu.memory_space<any>> -> memref<1x128xf32, #tpu.memory_space<any>>
      %c5_i32_74 = arith.constant 5 : i32
      %c0_i32_75 = arith.constant 0 : i32
      %112 = tpu.memref_slice %arg5[%c0_i32_71, %c5_i32_74, %c0_i32_75] : memref<2x8x128xf32, #tpu.memory_space<vmem>> -> memref<1x1x128xf32, #tpu.memory_space<vmem>>
      %113 = tpu.memref_squeeze %112 : memref<1x1x128xf32, #tpu.memory_space<vmem>> -> memref<1x128xf32, #tpu.memory_space<vmem>>
      %114 = tpu.memref_slice %arg6[%c0_i32_72, %c5_i32_73] : memref<2x8x!tpu.dma_semaphore, #tpu.memory_space<semaphore_mem>> -> memref<1x1x!tpu.dma_semaphore, #tpu.memory_space<semaphore_mem>>
      %115 = tpu.memref_squeeze %114 : memref<1x1x!tpu.dma_semaphore, #tpu.memory_space<semaphore_mem>> -> memref<!tpu.dma_semaphore, #tpu.memory_space<semaphore_mem>>
      tpu.enqueue_dma source(%111 : memref<1x128xf32, #tpu.memory_space<any>>) target(%113 : memref<1x128xf32, #tpu.memory_space<vmem>>) target_semaphore(%115 : memref<!tpu.dma_semaphore, #tpu.memory_space<semaphore_mem>>)
      %c6 = arith.constant 6 : index
      %116 = memref.load %arg2[%c6] : memref<24xi32, #tpu.memory_space<smem>>
      %c0_i32_76 = arith.constant 0 : i32
      %c0_i32_77 = arith.constant 0 : i32
      %c6_i32_78 = arith.constant 6 : i32
      %117 = tpu.memref_slice %arg3[%116, %1] : memref<64x128xf32, #tpu.memory_space<any>> -> memref<1x128xf32, #tpu.memory_space<any>>
      %c6_i32_79 = arith.constant 6 : i32
      %c0_i32_80 = arith.constant 0 : i32
      %118 = tpu.memref_slice %arg5[%c0_i32_76, %c6_i32_79, %c0_i32_80] : memref<2x8x128xf32, #tpu.memory_space<vmem>> -> memref<1x1x128xf32, #tpu.memory_space<vmem>>
      %119 = tpu.memref_squeeze %118 : memref<1x1x128xf32, #tpu.memory_space<vmem>> -> memref<1x128xf32, #tpu.memory_space<vmem>>
      %120 = tpu.memref_slice %arg6[%c0_i32_77, %c6_i32_78] : memref<2x8x!tpu.dma_semaphore, #tpu.memory_space<semaphore_mem>> -> memref<1x1x!tpu.dma_semaphore, #tpu.memory_space<semaphore_mem>>
      %121 = tpu.memref_squeeze %120 : memref<1x1x!tpu.dma_semaphore, #tpu.memory_space<semaphore_mem>> -> memref<!tpu.dma_semaphore, #tpu.memory_space<semaphore_mem>>
      tpu.enqueue_dma source(%117 : memref<1x128xf32, #tpu.memory_space<any>>) target(%119 : memref<1x128xf32, #tpu.memory_space<vmem>>) target_semaphore(%121 : memref<!tpu.dma_semaphore, #tpu.memory_space<semaphore_mem>>)
      %c7 = arith.constant 7 : index
      %122 = memref.load %arg2[%c7] : memref<24xi32, #tpu.memory_space<smem>>
      %c0_i32_81 = arith.constant 0 : i32
      %c0_i32_82 = arith.constant 0 : i32
      %c7_i32_83 = arith.constant 7 : i32
      %123 = tpu.memref_slice %arg3[%122, %1] : memref<64x128xf32, #tpu.memory_space<any>> -> memref<1x128xf32, #tpu.memory_space<any>>
      %c7_i32_84 = arith.constant 7 : i32
      %c0_i32_85 = arith.constant 0 : i32
      %124 = tpu.memref_slice %arg5[%c0_i32_81, %c7_i32_84, %c0_i32_85] : memref<2x8x128xf32, #tpu.memory_space<vmem>> -> memref<1x1x128xf32, #tpu.memory_space<vmem>>
      %125 = tpu.memref_squeeze %124 : memref<1x1x128xf32, #tpu.memory_space<vmem>> -> memref<1x128xf32, #tpu.memory_space<vmem>>
      %126 = tpu.memref_slice %arg6[%c0_i32_82, %c7_i32_83] : memref<2x8x!tpu.dma_semaphore, #tpu.memory_space<semaphore_mem>> -> memref<1x1x!tpu.dma_semaphore, #tpu.memory_space<semaphore_mem>>
      %127 = tpu.memref_squeeze %126 : memref<1x1x!tpu.dma_semaphore, #tpu.memory_space<semaphore_mem>> -> memref<!tpu.dma_semaphore, #tpu.memory_space<semaphore_mem>>
      tpu.enqueue_dma source(%123 : memref<1x128xf32, #tpu.memory_space<any>>) target(%125 : memref<1x128xf32, #tpu.memory_space<vmem>>) target_semaphore(%127 : memref<!tpu.dma_semaphore, #tpu.memory_space<semaphore_mem>>)
    } else {
    }
    %c1_i32 = arith.constant 1 : i32
    %5 = arith.addi %arg1, %c1_i32 : i32
    %c3_i32 = arith.constant 3 : i32
    %6 = arith.cmpi slt, %5, %c3_i32 : i32
    %7 = arith.extui %6 : i1 to i32
    %c0_i32_1 = arith.constant 0 : i32
    %8 = arith.cmpi ne, %7, %c0_i32_1 : i32
    scf.if %8 {
      %c1_i32_42 = arith.constant 1 : i32
      %78 = arith.addi %arg1, %c1_i32_42 : i32
      %c1_i32_43 = arith.constant 1 : i32
      %79 = arith.addi %arg1, %c1_i32_43 : i32
      %c2_i32_44 = arith.constant 2 : i32
      %c0_i32_45 = arith.constant 0 : i32
      %80 = arith.cmpi eq, %c2_i32_44, %c0_i32_45 : i32
      %c1_i32_46 = arith.constant 1 : i32
      %81 = arith.select %80, %c1_i32_46, %c2_i32_44 : i32
      %82 = arith.remsi %79, %81 : i32
      %c0_i32_47 = arith.constant 0 : i32
      %83 = arith.cmpi ne, %82, %c0_i32_47 : i32
      %c0_i32_48 = arith.constant 0 : i32
      %84 = arith.cmpi slt, %82, %c0_i32_48 : i32
      %c0_i32_49 = arith.constant 0 : i32
      %85 = arith.cmpi slt, %81, %c0_i32_49 : i32
      %86 = arith.xori %84, %85 : i1
      %87 = arith.andi %86, %83 : i1
      %88 = arith.addi %82, %81 : i32
      %89 = arith.select %87, %88, %82 : i32
      %c8_i32_50 = arith.constant 8 : i32
      %90 = arith.muli %78, %c8_i32_50 : i32
      %c0_i32_51 = arith.constant 0 : i32
      %91 = arith.addi %90, %c0_i32_51 : i32
      %92 = arith.index_cast %91 : i32 to index
      %93 = memref.load %arg2[%92] : memref<24xi32, #tpu.memory_space<smem>>
      %c0_i32_52 = arith.constant 0 : i32
      %94 = tpu.memref_slice %arg3[%93, %1] : memref<64x128xf32, #tpu.memory_space<any>> -> memref<1x128xf32, #tpu.memory_space<any>>
      %c0_i32_53 = arith.constant 0 : i32
      %c0_i32_54 = arith.constant 0 : i32
      %95 = tpu.memref_slice %arg5[%89, %c0_i32_53, %c0_i32_54] : memref<2x8x128xf32, #tpu.memory_space<vmem>> -> memref<1x1x128xf32, #tpu.memory_space<vmem>>
      %96 = tpu.memref_squeeze %95 : memref<1x1x128xf32, #tpu.memory_space<vmem>> -> memref<1x128xf32, #tpu.memory_space<vmem>>
      %97 = tpu.memref_slice %arg6[%89, %c0_i32_52] : memref<2x8x!tpu.dma_semaphore, #tpu.memory_space<semaphore_mem>> -> memref<1x1x!tpu.dma_semaphore, #tpu.memory_space<semaphore_mem>>
      %98 = tpu.memref_squeeze %97 : memref<1x1x!tpu.dma_semaphore, #tpu.memory_space<semaphore_mem>> -> memref<!tpu.dma_semaphore, #tpu.memory_space<semaphore_mem>>
      tpu.enqueue_dma source(%94 : memref<1x128xf32, #tpu.memory_space<any>>) target(%96 : memref<1x128xf32, #tpu.memory_space<vmem>>) target_semaphore(%98 : memref<!tpu.dma_semaphore, #tpu.memory_space<semaphore_mem>>)
      %c8_i32_55 = arith.constant 8 : i32
      %99 = arith.muli %78, %c8_i32_55 : i32
      %c1_i32_56 = arith.constant 1 : i32
      %100 = arith.addi %99, %c1_i32_56 : i32
      %101 = arith.index_cast %100 : i32 to index
      %102 = memref.load %arg2[%101] : memref<24xi32, #tpu.memory_space<smem>>
      %c1_i32_57 = arith.constant 1 : i32
      %103 = tpu.memref_slice %arg3[%102, %1] : memref<64x128xf32, #tpu.memory_space<any>> -> memref<1x128xf32, #tpu.memory_space<any>>
      %c1_i32_58 = arith.constant 1 : i32
      %c0_i32_59 = arith.constant 0 : i32
      %104 = tpu.memref_slice %arg5[%89, %c1_i32_58, %c0_i32_59] : memref<2x8x128xf32, #tpu.memory_space<vmem>> -> memref<1x1x128xf32, #tpu.memory_space<vmem>>
      %105 = tpu.memref_squeeze %104 : memref<1x1x128xf32, #tpu.memory_space<vmem>> -> memref<1x128xf32, #tpu.memory_space<vmem>>
      %106 = tpu.memref_slice %arg6[%89, %c1_i32_57] : memref<2x8x!tpu.dma_semaphore, #tpu.memory_space<semaphore_mem>> -> memref<1x1x!tpu.dma_semaphore, #tpu.memory_space<semaphore_mem>>
      %107 = tpu.memref_squeeze %106 : memref<1x1x!tpu.dma_semaphore, #tpu.memory_space<semaphore_mem>> -> memref<!tpu.dma_semaphore, #tpu.memory_space<semaphore_mem>>
      tpu.enqueue_dma source(%103 : memref<1x128xf32, #tpu.memory_space<any>>) target(%105 : memref<1x128xf32, #tpu.memory_space<vmem>>) target_semaphore(%107 : memref<!tpu.dma_semaphore, #tpu.memory_space<semaphore_mem>>)
      %c8_i32_60 = arith.constant 8 : i32
      %108 = arith.muli %78, %c8_i32_60 : i32
      %c2_i32_61 = arith.constant 2 : i32
      %109 = arith.addi %108, %c2_i32_61 : i32
      %110 = arith.index_cast %109 : i32 to index
      %111 = memref.load %arg2[%110] : memref<24xi32, #tpu.memory_space<smem>>
      %c2_i32_62 = arith.constant 2 : i32
      %112 = tpu.memref_slice %arg3[%111, %1] : memref<64x128xf32, #tpu.memory_space<any>> -> memref<1x128xf32, #tpu.memory_space<any>>
      %c2_i32_63 = arith.constant 2 : i32
      %c0_i32_64 = arith.constant 0 : i32
      %113 = tpu.memref_slice %arg5[%89, %c2_i32_63, %c0_i32_64] : memref<2x8x128xf32, #tpu.memory_space<vmem>> -> memref<1x1x128xf32, #tpu.memory_space<vmem>>
      %114 = tpu.memref_squeeze %113 : memref<1x1x128xf32, #tpu.memory_space<vmem>> -> memref<1x128xf32, #tpu.memory_space<vmem>>
      %115 = tpu.memref_slice %arg6[%89, %c2_i32_62] : memref<2x8x!tpu.dma_semaphore, #tpu.memory_space<semaphore_mem>> -> memref<1x1x!tpu.dma_semaphore, #tpu.memory_space<semaphore_mem>>
      %116 = tpu.memref_squeeze %115 : memref<1x1x!tpu.dma_semaphore, #tpu.memory_space<semaphore_mem>> -> memref<!tpu.dma_semaphore, #tpu.memory_space<semaphore_mem>>
      tpu.enqueue_dma source(%112 : memref<1x128xf32, #tpu.memory_space<any>>) target(%114 : memref<1x128xf32, #tpu.memory_space<vmem>>) target_semaphore(%116 : memref<!tpu.dma_semaphore, #tpu.memory_space<semaphore_mem>>)
      %c8_i32_65 = arith.constant 8 : i32
      %117 = arith.muli %78, %c8_i32_65 : i32
      %c3_i32_66 = arith.constant 3 : i32
      %118 = arith.addi %117, %c3_i32_66 : i32
      %119 = arith.index_cast %118 : i32 to index
      %120 = memref.load %arg2[%119] : memref<24xi32, #tpu.memory_space<smem>>
      %c3_i32_67 = arith.constant 3 : i32
      %121 = tpu.memref_slice %arg3[%120, %1] : memref<64x128xf32, #tpu.memory_space<any>> -> memref<1x128xf32, #tpu.memory_space<any>>
      %c3_i32_68 = arith.constant 3 : i32
      %c0_i32_69 = arith.constant 0 : i32
      %122 = tpu.memref_slice %arg5[%89, %c3_i32_68, %c0_i32_69] : memref<2x8x128xf32, #tpu.memory_space<vmem>> -> memref<1x1x128xf32, #tpu.memory_space<vmem>>
      %123 = tpu.memref_squeeze %122 : memref<1x1x128xf32, #tpu.memory_space<vmem>> -> memref<1x128xf32, #tpu.memory_space<vmem>>
      %124 = tpu.memref_slice %arg6[%89, %c3_i32_67] : memref<2x8x!tpu.dma_semaphore, #tpu.memory_space<semaphore_mem>> -> memref<1x1x!tpu.dma_semaphore, #tpu.memory_space<semaphore_mem>>
      %125 = tpu.memref_squeeze %124 : memref<1x1x!tpu.dma_semaphore, #tpu.memory_space<semaphore_mem>> -> memref<!tpu.dma_semaphore, #tpu.memory_space<semaphore_mem>>
      tpu.enqueue_dma source(%121 : memref<1x128xf32, #tpu.memory_space<any>>) target(%123 : memref<1x128xf32, #tpu.memory_space<vmem>>) target_semaphore(%125 : memref<!tpu.dma_semaphore, #tpu.memory_space<semaphore_mem>>)
      %c8_i32_70 = arith.constant 8 : i32
      %126 = arith.muli %78, %c8_i32_70 : i32
      %c4_i32_71 = arith.constant 4 : i32
      %127 = arith.addi %126, %c4_i32_71 : i32
      %128 = arith.index_cast %127 : i32 to index
      %129 = memref.load %arg2[%128] : memref<24xi32, #tpu.memory_space<smem>>
      %c4_i32_72 = arith.constant 4 : i32
      %130 = tpu.memref_slice %arg3[%129, %1] : memref<64x128xf32, #tpu.memory_space<any>> -> memref<1x128xf32, #tpu.memory_space<any>>
      %c4_i32_73 = arith.constant 4 : i32
      %c0_i32_74 = arith.constant 0 : i32
      %131 = tpu.memref_slice %arg5[%89, %c4_i32_73, %c0_i32_74] : memref<2x8x128xf32, #tpu.memory_space<vmem>> -> memref<1x1x128xf32, #tpu.memory_space<vmem>>
      %132 = tpu.memref_squeeze %131 : memref<1x1x128xf32, #tpu.memory_space<vmem>> -> memref<1x128xf32, #tpu.memory_space<vmem>>
      %133 = tpu.memref_slice %arg6[%89, %c4_i32_72] : memref<2x8x!tpu.dma_semaphore, #tpu.memory_space<semaphore_mem>> -> memref<1x1x!tpu.dma_semaphore, #tpu.memory_space<semaphore_mem>>
      %134 = tpu.memref_squeeze %133 : memref<1x1x!tpu.dma_semaphore, #tpu.memory_space<semaphore_mem>> -> memref<!tpu.dma_semaphore, #tpu.memory_space<semaphore_mem>>
      tpu.enqueue_dma source(%130 : memref<1x128xf32, #tpu.memory_space<any>>) target(%132 : memref<1x128xf32, #tpu.memory_space<vmem>>) target_semaphore(%134 : memref<!tpu.dma_semaphore, #tpu.memory_space<semaphore_mem>>)
      %c8_i32_75 = arith.constant 8 : i32
      %135 = arith.muli %78, %c8_i32_75 : i32
      %c5_i32_76 = arith.constant 5 : i32
      %136 = arith.addi %135, %c5_i32_76 : i32
      %137 = arith.index_cast %136 : i32 to index
      %138 = memref.load %arg2[%137] : memref<24xi32, #tpu.memory_space<smem>>
      %c5_i32_77 = arith.constant 5 : i32
      %139 = tpu.memref_slice %arg3[%138, %1] : memref<64x128xf32, #tpu.memory_space<any>> -> memref<1x128xf32, #tpu.memory_space<any>>
      %c5_i32_78 = arith.constant 5 : i32
      %c0_i32_79 = arith.constant 0 : i32
      %140 = tpu.memref_slice %arg5[%89, %c5_i32_78, %c0_i32_79] : memref<2x8x128xf32, #tpu.memory_space<vmem>> -> memref<1x1x128xf32, #tpu.memory_space<vmem>>
      %141 = tpu.memref_squeeze %140 : memref<1x1x128xf32, #tpu.memory_space<vmem>> -> memref<1x128xf32, #tpu.memory_space<vmem>>
      %142 = tpu.memref_slice %arg6[%89, %c5_i32_77] : memref<2x8x!tpu.dma_semaphore, #tpu.memory_space<semaphore_mem>> -> memref<1x1x!tpu.dma_semaphore, #tpu.memory_space<semaphore_mem>>
      %143 = tpu.memref_squeeze %142 : memref<1x1x!tpu.dma_semaphore, #tpu.memory_space<semaphore_mem>> -> memref<!tpu.dma_semaphore, #tpu.memory_space<semaphore_mem>>
      tpu.enqueue_dma source(%139 : memref<1x128xf32, #tpu.memory_space<any>>) target(%141 : memref<1x128xf32, #tpu.memory_space<vmem>>) target_semaphore(%143 : memref<!tpu.dma_semaphore, #tpu.memory_space<semaphore_mem>>)
      %c8_i32_80 = arith.constant 8 : i32
      %144 = arith.muli %78, %c8_i32_80 : i32
      %c6_i32_81 = arith.constant 6 : i32
      %145 = arith.addi %144, %c6_i32_81 : i32
      %146 = arith.index_cast %145 : i32 to index
      %147 = memref.load %arg2[%146] : memref<24xi32, #tpu.memory_space<smem>>
      %c6_i32_82 = arith.constant 6 : i32
      %148 = tpu.memref_slice %arg3[%147, %1] : memref<64x128xf32, #tpu.memory_space<any>> -> memref<1x128xf32, #tpu.memory_space<any>>
      %c6_i32_83 = arith.constant 6 : i32
      %c0_i32_84 = arith.constant 0 : i32
      %149 = tpu.memref_slice %arg5[%89, %c6_i32_83, %c0_i32_84] : memref<2x8x128xf32, #tpu.memory_space<vmem>> -> memref<1x1x128xf32, #tpu.memory_space<vmem>>
      %150 = tpu.memref_squeeze %149 : memref<1x1x128xf32, #tpu.memory_space<vmem>> -> memref<1x128xf32, #tpu.memory_space<vmem>>
      %151 = tpu.memref_slice %arg6[%89, %c6_i32_82] : memref<2x8x!tpu.dma_semaphore, #tpu.memory_space<semaphore_mem>> -> memref<1x1x!tpu.dma_semaphore, #tpu.memory_space<semaphore_mem>>
      %152 = tpu.memref_squeeze %151 : memref<1x1x!tpu.dma_semaphore, #tpu.memory_space<semaphore_mem>> -> memref<!tpu.dma_semaphore, #tpu.memory_space<semaphore_mem>>
      tpu.enqueue_dma source(%148 : memref<1x128xf32, #tpu.memory_space<any>>) target(%150 : memref<1x128xf32, #tpu.memory_space<vmem>>) target_semaphore(%152 : memref<!tpu.dma_semaphore, #tpu.memory_space<semaphore_mem>>)
      %c8_i32_85 = arith.constant 8 : i32
      %153 = arith.muli %78, %c8_i32_85 : i32
      %c7_i32_86 = arith.constant 7 : i32
      %154 = arith.addi %153, %c7_i32_86 : i32
      %155 = arith.index_cast %154 : i32 to index
      %156 = memref.load %arg2[%155] : memref<24xi32, #tpu.memory_space<smem>>
      %c7_i32_87 = arith.constant 7 : i32
      %157 = tpu.memref_slice %arg3[%156, %1] : memref<64x128xf32, #tpu.memory_space<any>> -> memref<1x128xf32, #tpu.memory_space<any>>
      %c7_i32_88 = arith.constant 7 : i32
      %c0_i32_89 = arith.constant 0 : i32
      %158 = tpu.memref_slice %arg5[%89, %c7_i32_88, %c0_i32_89] : memref<2x8x128xf32, #tpu.memory_space<vmem>> -> memref<1x1x128xf32, #tpu.memory_space<vmem>>
      %159 = tpu.memref_squeeze %158 : memref<1x1x128xf32, #tpu.memory_space<vmem>> -> memref<1x128xf32, #tpu.memory_space<vmem>>
      %160 = tpu.memref_slice %arg6[%89, %c7_i32_87] : memref<2x8x!tpu.dma_semaphore, #tpu.memory_space<semaphore_mem>> -> memref<1x1x!tpu.dma_semaphore, #tpu.memory_space<semaphore_mem>>
      %161 = tpu.memref_squeeze %160 : memref<1x1x!tpu.dma_semaphore, #tpu.memory_space<semaphore_mem>> -> memref<!tpu.dma_semaphore, #tpu.memory_space<semaphore_mem>>
      tpu.enqueue_dma source(%157 : memref<1x128xf32, #tpu.memory_space<any>>) target(%159 : memref<1x128xf32, #tpu.memory_space<vmem>>) target_semaphore(%161 : memref<!tpu.dma_semaphore, #tpu.memory_space<semaphore_mem>>)
    } else {
    }
    %c2_i32 = arith.constant 2 : i32
    %c0_i32_2 = arith.constant 0 : i32
    %9 = arith.cmpi eq, %c2_i32, %c0_i32_2 : i32
    %c1_i32_3 = arith.constant 1 : i32
    %10 = arith.select %9, %c1_i32_3, %c2_i32 : i32
    %11 = arith.remsi %arg1, %10 : i32
    %c0_i32_4 = arith.constant 0 : i32
    %12 = arith.cmpi ne, %11, %c0_i32_4 : i32
    %c0_i32_5 = arith.constant 0 : i32
    %13 = arith.cmpi slt, %11, %c0_i32_5 : i32
    %c0_i32_6 = arith.constant 0 : i32
    %14 = arith.cmpi slt, %10, %c0_i32_6 : i32
    %15 = arith.xori %13, %14 : i1
    %16 = arith.andi %15, %12 : i1
    %17 = arith.addi %11, %10 : i32
    %18 = arith.select %16, %17, %11 : i32
    %c0_i32_7 = arith.constant 0 : i32
    %c0_i32_8 = arith.constant 0 : i32
    %19 = tpu.memref_slice %arg3[%c0_i32_8, %1] : memref<64x128xf32, #tpu.memory_space<any>> -> memref<1x128xf32, #tpu.memory_space<any>>
    %c0_i32_9 = arith.constant 0 : i32
    %c0_i32_10 = arith.constant 0 : i32
    %20 = tpu.memref_slice %arg5[%18, %c0_i32_9, %c0_i32_10] : memref<2x8x128xf32, #tpu.memory_space<vmem>> -> memref<1x1x128xf32, #tpu.memory_space<vmem>>
    %21 = tpu.memref_squeeze %20 : memref<1x1x128xf32, #tpu.memory_space<vmem>> -> memref<1x128xf32, #tpu.memory_space<vmem>>
    %22 = tpu.memref_slice %arg6[%18, %c0_i32_7] : memref<2x8x!tpu.dma_semaphore, #tpu.memory_space<semaphore_mem>> -> memref<1x1x!tpu.dma_semaphore, #tpu.memory_space<semaphore_mem>>
    %23 = tpu.memref_squeeze %22 : memref<1x1x!tpu.dma_semaphore, #tpu.memory_space<semaphore_mem>> -> memref<!tpu.dma_semaphore, #tpu.memory_space<semaphore_mem>>
    tpu.wait_dma2 semaphore(%23 : memref<!tpu.dma_semaphore, #tpu.memory_space<semaphore_mem>>) src(%19 : memref<1x128xf32, #tpu.memory_space<any>>) dst(%21 : memref<1x128xf32, #tpu.memory_space<vmem>>)
    %c1_i32_11 = arith.constant 1 : i32
    %c0_i32_12 = arith.constant 0 : i32
    %24 = tpu.memref_slice %arg3[%c0_i32_12, %1] : memref<64x128xf32, #tpu.memory_space<any>> -> memref<1x128xf32, #tpu.memory_space<any>>
    %c1_i32_13 = arith.constant 1 : i32
    %c0_i32_14 = arith.constant 0 : i32
    %25 = tpu.memref_slice %arg5[%18, %c1_i32_13, %c0_i32_14] : memref<2x8x128xf32, #tpu.memory_space<vmem>> -> memref<1x1x128xf32, #tpu.memory_space<vmem>>
    %26 = tpu.memref_squeeze %25 : memref<1x1x128xf32, #tpu.memory_space<vmem>> -> memref<1x128xf32, #tpu.memory_space<vmem>>
    %27 = tpu.memref_slice %arg6[%18, %c1_i32_11] : memref<2x8x!tpu.dma_semaphore, #tpu.memory_space<semaphore_mem>> -> memref<1x1x!tpu.dma_semaphore, #tpu.memory_space<semaphore_mem>>
    %28 = tpu.memref_squeeze %27 : memref<1x1x!tpu.dma_semaphore, #tpu.memory_space<semaphore_mem>> -> memref<!tpu.dma_semaphore, #tpu.memory_space<semaphore_mem>>
    tpu.wait_dma2 semaphore(%28 : memref<!tpu.dma_semaphore, #tpu.memory_space<semaphore_mem>>) src(%24 : memref<1x128xf32, #tpu.memory_space<any>>) dst(%26 : memref<1x128xf32, #tpu.memory_space<vmem>>)
    %c2_i32_15 = arith.constant 2 : i32
    %c0_i32_16 = arith.constant 0 : i32
    %29 = tpu.memref_slice %arg3[%c0_i32_16, %1] : memref<64x128xf32, #tpu.memory_space<any>> -> memref<1x128xf32, #tpu.memory_space<any>>
    %c2_i32_17 = arith.constant 2 : i32
    %c0_i32_18 = arith.constant 0 : i32
    %30 = tpu.memref_slice %arg5[%18, %c2_i32_17, %c0_i32_18] : memref<2x8x128xf32, #tpu.memory_space<vmem>> -> memref<1x1x128xf32, #tpu.memory_space<vmem>>
    %31 = tpu.memref_squeeze %30 : memref<1x1x128xf32, #tpu.memory_space<vmem>> -> memref<1x128xf32, #tpu.memory_space<vmem>>
    %32 = tpu.memref_slice %arg6[%18, %c2_i32_15] : memref<2x8x!tpu.dma_semaphore, #tpu.memory_space<semaphore_mem>> -> memref<1x1x!tpu.dma_semaphore, #tpu.memory_space<semaphore_mem>>
    %33 = tpu.memref_squeeze %32 : memref<1x1x!tpu.dma_semaphore, #tpu.memory_space<semaphore_mem>> -> memref<!tpu.dma_semaphore, #tpu.memory_space<semaphore_mem>>
    tpu.wait_dma2 semaphore(%33 : memref<!tpu.dma_semaphore, #tpu.memory_space<semaphore_mem>>) src(%29 : memref<1x128xf32, #tpu.memory_space<any>>) dst(%31 : memref<1x128xf32, #tpu.memory_space<vmem>>)
    %c3_i32_19 = arith.constant 3 : i32
    %c0_i32_20 = arith.constant 0 : i32
    %34 = tpu.memref_slice %arg3[%c0_i32_20, %1] : memref<64x128xf32, #tpu.memory_space<any>> -> memref<1x128xf32, #tpu.memory_space<any>>
    %c3_i32_21 = arith.constant 3 : i32
    %c0_i32_22 = arith.constant 0 : i32
    %35 = tpu.memref_slice %arg5[%18, %c3_i32_21, %c0_i32_22] : memref<2x8x128xf32, #tpu.memory_space<vmem>> -> memref<1x1x128xf32, #tpu.memory_space<vmem>>
    %36 = tpu.memref_squeeze %35 : memref<1x1x128xf32, #tpu.memory_space<vmem>> -> memref<1x128xf32, #tpu.memory_space<vmem>>
    %37 = tpu.memref_slice %arg6[%18, %c3_i32_19] : memref<2x8x!tpu.dma_semaphore, #tpu.memory_space<semaphore_mem>> -> memref<1x1x!tpu.dma_semaphore, #tpu.memory_space<semaphore_mem>>
    %38 = tpu.memref_squeeze %37 : memref<1x1x!tpu.dma_semaphore, #tpu.memory_space<semaphore_mem>> -> memref<!tpu.dma_semaphore, #tpu.memory_space<semaphore_mem>>
    tpu.wait_dma2 semaphore(%38 : memref<!tpu.dma_semaphore, #tpu.memory_space<semaphore_mem>>) src(%34 : memref<1x128xf32, #tpu.memory_space<any>>) dst(%36 : memref<1x128xf32, #tpu.memory_space<vmem>>)
    %c4_i32 = arith.constant 4 : i32
    %c0_i32_23 = arith.constant 0 : i32
    %39 = tpu.memref_slice %arg3[%c0_i32_23, %1] : memref<64x128xf32, #tpu.memory_space<any>> -> memref<1x128xf32, #tpu.memory_space<any>>
    %c4_i32_24 = arith.constant 4 : i32
    %c0_i32_25 = arith.constant 0 : i32
    %40 = tpu.memref_slice %arg5[%18, %c4_i32_24, %c0_i32_25] : memref<2x8x128xf32, #tpu.memory_space<vmem>> -> memref<1x1x128xf32, #tpu.memory_space<vmem>>
    %41 = tpu.memref_squeeze %40 : memref<1x1x128xf32, #tpu.memory_space<vmem>> -> memref<1x128xf32, #tpu.memory_space<vmem>>
    %42 = tpu.memref_slice %arg6[%18, %c4_i32] : memref<2x8x!tpu.dma_semaphore, #tpu.memory_space<semaphore_mem>> -> memref<1x1x!tpu.dma_semaphore, #tpu.memory_space<semaphore_mem>>
    %43 = tpu.memref_squeeze %42 : memref<1x1x!tpu.dma_semaphore, #tpu.memory_space<semaphore_mem>> -> memref<!tpu.dma_semaphore, #tpu.memory_space<semaphore_mem>>
    tpu.wait_dma2 semaphore(%43 : memref<!tpu.dma_semaphore, #tpu.memory_space<semaphore_mem>>) src(%39 : memref<1x128xf32, #tpu.memory_space<any>>) dst(%41 : memref<1x128xf32, #tpu.memory_space<vmem>>)
    %c5_i32 = arith.constant 5 : i32
    %c0_i32_26 = arith.constant 0 : i32
    %44 = tpu.memref_slice %arg3[%c0_i32_26, %1] : memref<64x128xf32, #tpu.memory_space<any>> -> memref<1x128xf32, #tpu.memory_space<any>>
    %c5_i32_27 = arith.constant 5 : i32
    %c0_i32_28 = arith.constant 0 : i32
    %45 = tpu.memref_slice %arg5[%18, %c5_i32_27, %c0_i32_28] : memref<2x8x128xf32, #tpu.memory_space<vmem>> -> memref<1x1x128xf32, #tpu.memory_space<vmem>>
    %46 = tpu.memref_squeeze %45 : memref<1x1x128xf32, #tpu.memory_space<vmem>> -> memref<1x128xf32, #tpu.memory_space<vmem>>
    %47 = tpu.memref_slice %arg6[%18, %c5_i32] : memref<2x8x!tpu.dma_semaphore, #tpu.memory_space<semaphore_mem>> -> memref<1x1x!tpu.dma_semaphore, #tpu.memory_space<semaphore_mem>>
    %48 = tpu.memref_squeeze %47 : memref<1x1x!tpu.dma_semaphore, #tpu.memory_space<semaphore_mem>> -> memref<!tpu.dma_semaphore, #tpu.memory_space<semaphore_mem>>
    tpu.wait_dma2 semaphore(%48 : memref<!tpu.dma_semaphore, #tpu.memory_space<semaphore_mem>>) src(%44 : memref<1x128xf32, #tpu.memory_space<any>>) dst(%46 : memref<1x128xf32, #tpu.memory_space<vmem>>)
    %c6_i32 = arith.constant 6 : i32
    %c0_i32_29 = arith.constant 0 : i32
    %49 = tpu.memref_slice %arg3[%c0_i32_29, %1] : memref<64x128xf32, #tpu.memory_space<any>> -> memref<1x128xf32, #tpu.memory_space<any>>
    %c6_i32_30 = arith.constant 6 : i32
    %c0_i32_31 = arith.constant 0 : i32
    %50 = tpu.memref_slice %arg5[%18, %c6_i32_30, %c0_i32_31] : memref<2x8x128xf32, #tpu.memory_space<vmem>> -> memref<1x1x128xf32, #tpu.memory_space<vmem>>
    %51 = tpu.memref_squeeze %50 : memref<1x1x128xf32, #tpu.memory_space<vmem>> -> memref<1x128xf32, #tpu.memory_space<vmem>>
    %52 = tpu.memref_slice %arg6[%18, %c6_i32] : memref<2x8x!tpu.dma_semaphore, #tpu.memory_space<semaphore_mem>> -> memref<1x1x!tpu.dma_semaphore, #tpu.memory_space<semaphore_mem>>
    %53 = tpu.memref_squeeze %52 : memref<1x1x!tpu.dma_semaphore, #tpu.memory_space<semaphore_mem>> -> memref<!tpu.dma_semaphore, #tpu.memory_space<semaphore_mem>>
    tpu.wait_dma2 semaphore(%53 : memref<!tpu.dma_semaphore, #tpu.memory_space<semaphore_mem>>) src(%49 : memref<1x128xf32, #tpu.memory_space<any>>) dst(%51 : memref<1x128xf32, #tpu.memory_space<vmem>>)
    %c7_i32 = arith.constant 7 : i32
    %c0_i32_32 = arith.constant 0 : i32
    %54 = tpu.memref_slice %arg3[%c0_i32_32, %1] : memref<64x128xf32, #tpu.memory_space<any>> -> memref<1x128xf32, #tpu.memory_space<any>>
    %c7_i32_33 = arith.constant 7 : i32
    %c0_i32_34 = arith.constant 0 : i32
    %55 = tpu.memref_slice %arg5[%18, %c7_i32_33, %c0_i32_34] : memref<2x8x128xf32, #tpu.memory_space<vmem>> -> memref<1x1x128xf32, #tpu.memory_space<vmem>>
    %56 = tpu.memref_squeeze %55 : memref<1x1x128xf32, #tpu.memory_space<vmem>> -> memref<1x128xf32, #tpu.memory_space<vmem>>
    %57 = tpu.memref_slice %arg6[%18, %c7_i32] : memref<2x8x!tpu.dma_semaphore, #tpu.memory_space<semaphore_mem>> -> memref<1x1x!tpu.dma_semaphore, #tpu.memory_space<semaphore_mem>>
    %58 = tpu.memref_squeeze %57 : memref<1x1x!tpu.dma_semaphore, #tpu.memory_space<semaphore_mem>> -> memref<!tpu.dma_semaphore, #tpu.memory_space<semaphore_mem>>
    tpu.wait_dma2 semaphore(%58 : memref<!tpu.dma_semaphore, #tpu.memory_space<semaphore_mem>>) src(%54 : memref<1x128xf32, #tpu.memory_space<any>>) dst(%56 : memref<1x128xf32, #tpu.memory_space<vmem>>)
    %59 = arith.index_cast %18 : i32 to index
    %c0 = arith.constant 0 : index
    %c0_35 = arith.constant 0 : index
    %60 = vector.load %arg5[%59, %c0, %c0_35] : memref<2x8x128xf32, #tpu.memory_space<vmem>>, vector<1x8x128xf32>
    %61 = vector.shape_cast %60 : vector<1x8x128xf32> to vector<8x128xf32>
    %62 = tpu.iota {dimensions = array<i32: 0>} : vector<8x1xi32>
    %c8_i32 = arith.constant 8 : i32
    %63 = arith.muli %arg1, %c8_i32 : i32
    %64 = vector.broadcast %63 : i32 to vector<8x1xi32>
    %65 = arith.addi %62, %64 : vector<8x1xi32>
    %c18_i32 = arith.constant 18 : i32
    %66 = vector.broadcast %c18_i32 : i32 to vector<8x1xi32>
    %67 = arith.cmpi slt, %65, %66 : vector<8x1xi32>
    %cst = arith.constant 0.000000e+00 : f32
    %68 = vector.shape_cast %67 : vector<8x1xi1> to vector<8x1xi1>
    %69 = vector.broadcast %68 : vector<8x1xi1> to vector<8x128xi1>
    %70 = vector.broadcast %cst : f32 to vector<8x128xf32>
    %71 = arith.select %69, %61, %70 : vector<8x128xi1>, vector<8x128xf32>
    %c0_36 = arith.constant 0 : index
    %c0_37 = arith.constant 0 : index
    %72 = vector.load %arg7[%c0_36, %c0_37] : memref<8x128xf32, #tpu.memory_space<vmem>>, vector<8x128xf32>
    %73 = arith.addf %72, %71 : vector<8x128xf32>
    %c0_38 = arith.constant 0 : index
    %c0_39 = arith.constant 0 : index
    %74 = vector.load %arg7[%c0_38, %c0_39] : memref<8x128xf32, #tpu.memory_space<vmem>>, vector<8x128xf32>
    tpu.vector_store %arg7[%c0_38, %c0_39], %73 {strides = array<i32>} : memref<8x128xf32, #tpu.memory_space<vmem>>, vector<8x128xf32>,
    %c2_i32_40 = arith.constant 2 : i32
    %75 = arith.cmpi eq, %arg1, %c2_i32_40 : i32
    %76 = arith.extui %75 : i1 to i32
    %c0_i32_41 = arith.constant 0 : i32
    %77 = arith.cmpi ne, %76, %c0_i32_41 : i32
    scf.if %77 {
      %c0_42 = arith.constant 0 : index
      %c0_43 = arith.constant 0 : index
      %78 = vector.load %arg7[%c0_42, %c0_43] : memref<8x128xf32, #tpu.memory_space<vmem>>, vector<8x128xf32>
      %cst_44 = arith.constant dense<0.000000e+00> : vector<128xf32>
      %79 = vector.multi_reduction <add>, %78, %cst_44 [0] : vector<8x128xf32> to vector<128xf32>
      %80 = vector.shape_cast %79 : vector<128xf32> to vector<1x128xf32>
      %c0_45 = arith.constant 0 : index
      %c0_46 = arith.constant 0 : index
      %81 = vector.load %arg4[%c0_45, %c0_46] : memref<1x128xf32, #tpu.memory_space<vmem>>, vector<1x128xf32>
      tpu.vector_store %arg4[%c0_45, %c0_46], %80 {strides = array<i32>} : memref<1x128xf32, #tpu.memory_space<vmem>>, vector<1x128xf32>,
    } else {
    }
    return
  }
  func.func @transform_1(%arg0: i32, %arg1: i32, %arg2: memref<24xi32, #tpu.memory_space<smem>>) -> (i32, i32) {
    %c0_i32 = arith.constant 0 : i32
    %c0_i32_0 = arith.constant 0 : i32
    return %c0_i32, %arg0 : i32, i32
  }
}

</mosaic_0001>

<llo_original>
// kernel: tpu_custom_call.1
$region0: #{tpu_custom_call.1}
  #allocation0 [shape = 'u32[]', space=smem, size = 0x4, offset = 0x4, fixed_abs, tag = 'smem constant byte address 0x4 - core index']
  #allocation1 [shape = 'u32[72,128]{1,0:T(1,128)}', space=vmem, size = 0x9000, scoped, tag = 'internal scratch']
  #allocation2 [shape = 'f32[2,8,128]{2,1,0:T(8,128)}', space=vmem, size = 0x2000, scoped, tag = 'scratch operand']
  #allocation3 [shape = 's32[16]{0}', space=sflag, size = 0x40, scoped, tag = 'scratch operand']
  #allocation4 [shape = 'f32[8,128]{1,0:T(8,128)}', space=vmem, size = 0x1000, scoped, tag = 'scratch operand']
  #allocation5 [shape = 's32[1]{0}', space=sflag, size = 0x4, scoped, tag = 'scoped memory for tpu_custom_call.1']
  #allocation6 [shape = 'u8[512]{0}', space=smem, size = 0x200, scoped, tag = 'prefetched SMEM operand 0']
  #allocation9 [shape = 's32[]', space=sflag, size = 0x4, offset = 0, fixed_abs, tag = 'sflag constant byte address 0x0 - dummy sync flag']
  #allocation10 [shape = 's32[]', space=sflag, size = 0x4, offset = 0, fixed_abs, tag = 'sflag constant byte address 0x0 - dummy sync flag']
  #allocation11 [shape = 'u32[]', space=smem, size = 0x4, offset = 0x44, fixed_abs, tag = 'smem constant byte address 0x44 - assertion arg 0']
  #allocation12 [shape = 'u32[]', space=smem, size = 0x4, offset = 0x48, fixed_abs, tag = 'smem constant byte address 0x48 - assertion arg 1']
  #allocation13 [shape = 's32[]', space=sflag, size = 0x4, offset = 0, fixed_abs, tag = 'sflag constant byte address 0x0 - dummy sync flag']
  #allocation14 [shape = 's32[]', space=sflag, size = 0x4, offset = 0, fixed_abs, tag = 'sflag constant byte address 0x0 - dummy sync flag']
  #allocation15 [shape = 's32[]', space=sflag, size = 0x4, offset = 0, fixed_abs, tag = 'sflag constant byte address 0x0 - dummy sync flag']
  #allocation16 [shape = 's32[]', space=sflag, size = 0x4, offset = 0, fixed_abs, tag = 'sflag constant byte address 0x0 - dummy sync flag']
  #allocation17 [shape = 's32[]', space=sflag, size = 0x4, offset = 0, fixed_abs, tag = 'sflag constant byte address 0x0 - dummy sync flag']
  #allocation18 [shape = 's32[]', space=sflag, size = 0x4, offset = 0, fixed_abs, tag = 'sflag constant byte address 0x0 - dummy sync flag']
  #allocation19 [shape = 's32[]', space=sflag, size = 0x4, offset = 0, fixed_abs, tag = 'sflag constant byte address 0x0 - dummy sync flag']
  #allocation20 [shape = 's32[]', space=sflag, size = 0x4, offset = 0, fixed_abs, tag = 'sflag constant byte address 0x0 - dummy sync flag']
  #allocation21 [shape = 's32[]', space=sflag, size = 0x4, offset = 0, fixed_abs, tag = 'sflag constant byte address 0x0 - dummy sync flag']
  #allocation22 [shape = 's32[]', space=sflag, size = 0x4, offset = 0, fixed_abs, tag = 'sflag constant byte address 0x0 - dummy sync flag']
  #allocation23 [shape = 's32[]', space=sflag, size = 0x4, offset = 0, fixed_abs, tag = 'sflag constant byte address 0x0 - dummy sync flag']
  #allocation24 [shape = 's32[]', space=sflag, size = 0x4, offset = 0, fixed_abs, tag = 'sflag constant byte address 0x0 - dummy sync flag']
  #allocation25 [shape = 's32[]', space=sflag, size = 0x4, offset = 0, fixed_abs, tag = 'sflag constant byte address 0x0 - dummy sync flag']
  #allocation26 [shape = 's32[]', space=sflag, size = 0x4, offset = 0, fixed_abs, tag = 'sflag constant byte address 0x0 - dummy sync flag']
  #allocation27 [shape = 's32[]', space=sflag, size = 0x4, offset = 0, fixed_abs, tag = 'sflag constant byte address 0x0 - dummy sync flag']
  #allocation28 [shape = 's32[]', space=sflag, size = 0x4, offset = 0, fixed_abs, tag = 'sflag constant byte address 0x0 - dummy sync flag']
  #allocation29 [shape = 's32[]', space=sflag, size = 0x4, offset = 0, fixed_abs, tag = 'sflag constant byte address 0x0 - dummy sync flag']
  #allocation30 [shape = 's32[]', space=sflag, size = 0x4, offset = 0, fixed_abs, tag = 'sflag constant byte address 0x0 - dummy sync flag']
  #allocation31 [shape = 's32[]', space=sflag, size = 0x4, offset = 0, fixed_abs, tag = 'sflag constant byte address 0x0 - dummy sync flag']
  #allocation32 [shape = 's32[]', space=sflag, size = 0x4, offset = 0, fixed_abs, tag = 'sflag constant byte address 0x0 - dummy sync flag']
  #allocation33 [shape = 's32[]', space=sflag, size = 0x4, offset = 0, fixed_abs, tag = 'sflag constant byte address 0x0 - dummy sync flag']
  #allocation34 [shape = 's32[]', space=sflag, size = 0x4, offset = 0, fixed_abs, tag = 'sflag constant byte address 0x0 - dummy sync flag']
  #allocation35 [shape = 's32[]', space=sflag, size = 0x4, offset = 0, fixed_abs, tag = 'sflag constant byte address 0x0 - dummy sync flag']
  #allocation36 [shape = 's32[]', space=sflag, size = 0x4, offset = 0, fixed_abs, tag = 'sflag constant byte address 0x0 - dummy sync flag']
  #allocation37 [shape = 's32[]', space=sflag, size = 0x4, offset = 0, fixed_abs, tag = 'sflag constant byte address 0x0 - dummy sync flag']
  #allocation38 [shape = 's32[]', space=sflag, size = 0x4, offset = 0, fixed_abs, tag = 'sflag constant byte address 0x0 - dummy sync flag']
  #allocation39 [shape = 's32[]', space=sflag, size = 0x4, offset = 0, fixed_abs, tag = 'sflag constant byte address 0x0 - dummy sync flag']
  #allocation40 [shape = 's32[]', space=sflag, size = 0x4, offset = 0, fixed_abs, tag = 'sflag constant byte address 0x0 - dummy sync flag']
  #allocation41 [shape = 's32[]', space=sflag, size = 0x4, offset = 0, fixed_abs, tag = 'sflag constant byte address 0x0 - dummy sync flag']
  #allocation42 [shape = 's32[]', space=sflag, size = 0x4, offset = 0, fixed_abs, tag = 'sflag constant byte address 0x0 - dummy sync flag']
  %s0 = inlined_call_operand.hbm [shape: s32[24], index: 0, kind: input, shape index: {}]
  %s1 = inlined_call_operand.hbm [shape: f32[64,128], index: 1, kind: input, shape index: {}]
  %s2 = inlined_call_operand.hbm [shape: f32[1,128], index: 2, kind: output, shape index: {}]
  %s3 = sld [smem:[#allocation0]]
  $region101: #{tpu_custom_call.1} parent=0
    _
  %s5 = ssub.s32 1, %s3
  %s6 = scalar_select 0, %s5, %s3
  %s8 = sshll.u32 %s0, 4
  %s9 = int_to_ptr.hbm [resolvable:$true] %s8
  %11 = dma.hbm_to_smem %s9, 16, [#allocation6], [#allocation5]
  %13 = dma.done [#allocation5], 16
  %14 = sfence
  $region1: #{tpu_custom_call.1} parent=0
    #allocation7 [shape = 'u8[512]{0}', space=vmem, size = 0x400, scoped, tag = 'output window, operand 0, single buffered']
    #allocation8 [shape = 's32[2]{0}', space=sflag, size = 0x8, scoped, tag = 'scoped memory for tpu_custom_call.1']
    %15 = vsyncpa [#allocation8], 0
    loop: start=0, step=1, limit=4
    $region2: #{tpu_custom_call.1} parent=1 // loop_pre_header
      _
    $region3: #{tpu_custom_call.1} parent=1 // loop_header
      %s17 = sphi 0, %s21
      %p18 = scmp.ge.s32.totalorder %s17, 4
      %s23 = sphi 0, %s33
      %s24 = sphi 0, %s29
      %s25 = sphi 0, %s23
      %s26 = sphi 0, %s24
      %s36 = sphi 0, %s38
      %s39 = sphi 0, %s36
      %s49 = sphi 0, %s39
    $region4: #{tpu_custom_call.1} parent=1 // loop_header_branch
      %20 = sbr.rel (%p18) target = $region8
    $region5: #{tpu_custom_call.1} parent=1 // loop_body
      %s22 = ssub.s32 %s17, 1
      %s27 = sadd.s32 1, %s24
      %p28 = scmp.ge.s32.totalorder %s27, 3
      %s29 = scalar_select %p28, 0, %s27
      %s30 = sadd.s32 1, %s23
      %s31 = scalar_select %p28, %s30, %s23
      %p32 = scmp.ge.s32.totalorder %s31, 1
      %s33 = scalar_select %p32, 0, %s31
      %s34 = ssub.s32 %s23, %s33
      %p35 = scmp.eq.s32.totalorder %s34, 0
      %s37 = sadd.s32 %s36, 1
      %s38 = scalar_select %p35, %s36, %s37
      %p40 = pneg %p35
      %p41 = scmp.eq.s32.totalorder %s17, 2
      %p42 = por %p40, %p41
      %p43 = scmp.ne.s32.totalorder %s36, %s39
      %p44 = scmp.eq.s32.totalorder %s17, 0
      %p45 = por %p43, %p44
      %p46 = scmp.ne.s32.totalorder %s36, %s39
      %p47 = scmp.eq.s32.totalorder %s22, 2
      %p48 = por %p46, %p47
      %p50 = scmp.ne.s32.totalorder %s39, %s49
      %p51 = scmp.eq.s32.totalorder %s22, 0
      %p52 = por %p50, %p51
      %p53 = scmp.lt.s32.totalorder %s17, 3
      // Predicated region
      $region9: #{tpu_custom_call.1} parent=5 // pred_check
        %p54 = pneg %p53
      $region10: #{tpu_custom_call.1} parent=5 // pred_check_branch
        %56 = sbr.rel (%p54) target = $region12
      $region11: #{tpu_custom_call.1} parent=5 // pred_region
        %p57 = pneg %p45
        %p58 = pneg %p42
        %s59 = smul.u32 %s23, 128
        %p60 = scmp.eq.s32.totalorder %s24, 0
        // Predicated region
        $region13: #{tpu_custom_call.1} parent=11 // pred_check
          %p61 = pneg %p60
        $region14: #{tpu_custom_call.1} parent=11 // pred_check_branch
          %63 = sbr.rel (%p61) target = $region16
        $region15: #{tpu_custom_call.1} parent=11 // pred_region
          %64 = vst [vmem:[#allocation4] sm:$0xff] 0.0
          %s65 = sld [smem:[#allocation6]]
          %s66 = sshra.s32 %s59, 7
          %s67 = sand.u32 %s59, 127
          %s68 = sadd.s32 %s66, %s65
          %s69 = scalar_lea.hbm %s1, %s68
          // Predicated region
          $region17: #{tpu_custom_call.1} parent=15 // pred_check
            _
          $region18: #{tpu_custom_call.1} parent=15 // pred_check_branch
            %71 = sbr.rel target = $region20
          $region19: #{tpu_custom_call.1} parent=15 // pred_region
            %72 = sst [smem:[#allocation11]] [#allocation10]
            %73 = sst [smem:[#allocation12]] [#allocation9]
          $region20: #{tpu_custom_call.1} parent=15 // pred_fallthru
            _
          %75 = shalt.err (0)
          %s77 = sshll.u32 %s69, 4
          %s78 = int_to_ptr.hbm [resolvable:$true] %s77
          %s79 = sshll.u32 [#allocation2], 4
          %s80 = int_to_ptr.vmem [resolvable:$true] %s79
          %82 = dma.hbm_to_vmem [thread:$0]  %s78, 16, %s80, [#allocation3]
          %s83 = sld [smem:[#allocation6 + $0x1]]
          %s84 = sadd.s32 %s66, %s83
          %s85 = scalar_lea.hbm %s1, %s84
          %s86 = scalar_lea.vmem [#allocation2], 1
          %s87 = scalar_lea.sflag [#allocation3], 1
          // Predicated region
          $region21: #{tpu_custom_call.1} parent=15 // pred_check
            _
          $region22: #{tpu_custom_call.1} parent=15 // pred_check_branch
            %89 = sbr.rel target = $region24
          $region23: #{tpu_custom_call.1} parent=15 // pred_region
            %90 = sst [smem:[#allocation11]] [#allocation14]
            %91 = sst [smem:[#allocation12]] [#allocation13]
          $region24: #{tpu_custom_call.1} parent=15 // pred_fallthru
            _
          %93 = shalt.err (0)
          %s95 = sshll.u32 %s85, 4
          %s96 = int_to_ptr.hbm [resolvable:$true] %s95
          %s97 = sshll.u32 %s86, 4
          %s98 = int_to_ptr.vmem [resolvable:$true] %s97
          %100 = dma.hbm_to_vmem [thread:$0]  %s96, 16, %s98, %s87
          %s101 = sld [smem:[#allocation6 + $0x2]]
          %s102 = sadd.s32 %s66, %s101
          %s103 = scalar_lea.hbm %s1, %s102
          %s104 = scalar_lea.vmem [#allocation2], 2
          %s105 = scalar_lea.sflag [#allocation3], 2
          // Predicated region
          $region25: #{tpu_custom_call.1} parent=15 // pred_check
            _
          $region26: #{tpu_custom_call.1} parent=15 // pred_check_branch
            %107 = sbr.rel target = $region28
          $region27: #{tpu_custom_call.1} parent=15 // pred_region
            %108 = sst [smem:[#allocation11]] [#allocation16]
            %109 = sst [smem:[#allocation12]] [#allocation15]
          $region28: #{tpu_custom_call.1} parent=15 // pred_fallthru
            _
          %111 = shalt.err (0)
          %s113 = sshll.u32 %s103, 4
          %s114 = int_to_ptr.hbm [resolvable:$true] %s113
          %s115 = sshll.u32 %s104, 4
          %s116 = int_to_ptr.vmem [resolvable:$true] %s115
          %118 = dma.hbm_to_vmem [thread:$0]  %s114, 16, %s116, %s105
          %s119 = sld [smem:[#allocation6 + $0x3]]
          %s120 = sadd.s32 %s66, %s119
          %s121 = scalar_lea.hbm %s1, %s120
          %s122 = scalar_lea.vmem [#allocation2], 3
          %s123 = scalar_lea.sflag [#allocation3], 3
          // Predicated region
          $region29: #{tpu_custom_call.1} parent=15 // pred_check
            _
          $region30: #{tpu_custom_call.1} parent=15 // pred_check_branch
            %125 = sbr.rel target = $region32
          $region31: #{tpu_custom_call.1} parent=15 // pred_region
            %126 = sst [smem:[#allocation11]] [#allocation18]
            %127 = sst [smem:[#allocation12]] [#allocation17]
          $region32: #{tpu_custom_call.1} parent=15 // pred_fallthru
            _
          %129 = shalt.err (0)
          %s131 = sshll.u32 %s121, 4
          %s132 = int_to_ptr.hbm [resolvable:$true] %s131
          %s133 = sshll.u32 %s122, 4
          %s134 = int_to_ptr.vmem [resolvable:$true] %s133
          %136 = dma.hbm_to_vmem [thread:$0]  %s132, 16, %s134, %s123
          %s137 = sld [smem:[#allocation6 + $0x4]]
          %s138 = sadd.s32 %s66, %s137
          %s139 = scalar_lea.hbm %s1, %s138
          %s140 = scalar_lea.vmem [#allocation2], 4
          %s141 = scalar_lea.sflag [#allocation3], 4
          // Predicated region
          $region33: #{tpu_custom_call.1} parent=15 // pred_check
            _
          $region34: #{tpu_custom_call.1} parent=15 // pred_check_branch
            %143 = sbr.rel target = $region36
          $region35: #{tpu_custom_call.1} parent=15 // pred_region
            %144 = sst [smem:[#allocation11]] [#allocation20]
            %145 = sst [smem:[#allocation12]] [#allocation19]
          $region36: #{tpu_custom_call.1} parent=15 // pred_fallthru
            _
          %147 = shalt.err (0)
          %s149 = sshll.u32 %s139, 4
          %s150 = int_to_ptr.hbm [resolvable:$true] %s149
          %s151 = sshll.u32 %s140, 4
          %s152 = int_to_ptr.vmem [resolvable:$true] %s151
          %154 = dma.hbm_to_vmem [thread:$0]  %s150, 16, %s152, %s141
          %s155 = sld [smem:[#allocation6 + $0x5]]
          %s156 = sadd.s32 %s66, %s155
          %s157 = scalar_lea.hbm %s1, %s156
          %s158 = scalar_lea.vmem [#allocation2], 5
          %s159 = scalar_lea.sflag [#allocation3], 5
          // Predicated region
          $region37: #{tpu_custom_call.1} parent=15 // pred_check
            _
          $region38: #{tpu_custom_call.1} parent=15 // pred_check_branch
            %161 = sbr.rel target = $region40
          $region39: #{tpu_custom_call.1} parent=15 // pred_region
            %162 = sst [smem:[#allocation11]] [#allocation22]
            %163 = sst [smem:[#allocation12]] [#allocation21]
          $region40: #{tpu_custom_call.1} parent=15 // pred_fallthru
            _
          %165 = shalt.err (0)
          %s167 = sshll.u32 %s157, 4
          %s168 = int_to_ptr.hbm [resolvable:$true] %s167
          %s169 = sshll.u32 %s158, 4
          %s170 = int_to_ptr.vmem [resolvable:$true] %s169
          %172 = dma.hbm_to_vmem [thread:$0]  %s168, 16, %s170, %s159
          %s173 = sld [smem:[#allocation6 + $0x6]]
          %s174 = sadd.s32 %s66, %s173
          %s175 = scalar_lea.hbm %s1, %s174
          %s176 = scalar_lea.vmem [#allocation2], 6
          %s177 = scalar_lea.sflag [#allocation3], 6
          // Predicated region
          $region41: #{tpu_custom_call.1} parent=15 // pred_check
            _
          $region42: #{tpu_custom_call.1} parent=15 // pred_check_branch
            %179 = sbr.rel target = $region44
          $region43: #{tpu_custom_call.1} parent=15 // pred_region
            %180 = sst [smem:[#allocation11]] [#allocation24]
            %181 = sst [smem:[#allocation12]] [#allocation23]
          $region44: #{tpu_custom_call.1} parent=15 // pred_fallthru
            _
          %183 = shalt.err (0)
          %s185 = sshll.u32 %s175, 4
          %s186 = int_to_ptr.hbm [resolvable:$true] %s185
          %s187 = sshll.u32 %s176, 4
          %s188 = int_to_ptr.vmem [resolvable:$true] %s187
          %190 = dma.hbm_to_vmem [thread:$0]  %s186, 16, %s188, %s177
          %s191 = sld [smem:[#allocation6 + $0x7]]
          %s192 = sadd.s32 %s66, %s191
          %s193 = scalar_lea.hbm %s1, %s192
          %s194 = scalar_lea.vmem [#allocation2], 7
          %s195 = scalar_lea.sflag [#allocation3], 7
          // Predicated region
          $region45: #{tpu_custom_call.1} parent=15 // pred_check
            _
          $region46: #{tpu_custom_call.1} parent=15 // pred_check_branch
            %197 = sbr.rel target = $region48
          $region47: #{tpu_custom_call.1} parent=15 // pred_region
            %198 = sst [smem:[#allocation11]] [#allocation26]
            %199 = sst [smem:[#allocation12]] [#allocation25]
          $region48: #{tpu_custom_call.1} parent=15 // pred_fallthru
            _
          %201 = shalt.err (0)
          %s203 = sshll.u32 %s193, 4
          %s204 = int_to_ptr.hbm [resolvable:$true] %s203
          %s205 = sshll.u32 %s194, 4
          %s206 = int_to_ptr.vmem [resolvable:$true] %s205
          %208 = dma.hbm_to_vmem [thread:$0]  %s204, 16, %s206, %s195
        $region16: #{tpu_custom_call.1} parent=11 // pred_fallthru
          _
        %s209 = sadd.s32 %s24, 1
        %p210 = scmp.lt.s32.totalorder %s209, 3
        // Predicated region
        $region49: #{tpu_custom_call.1} parent=11 // pred_check
          %p211 = pneg %p210
        $region50: #{tpu_custom_call.1} parent=11 // pred_check_branch
          %213 = sbr.rel (%p211) target = $region52
        $region51: #{tpu_custom_call.1} parent=11 // pred_region
          %p214 = scmp.lt.s32.totalorder %s209, 0
          %s215 = ssub.s32 0, %s209
          %s216 = scalar_select %p214, %s215, %s209
          %s217 = sand.u32 %s216, 1
          %s218 = ssub.s32 0, %s217
          %s219 = scalar_select %p214, %s218, %s217
          %p220 = scmp.ne.s32.totalorder %s219, 0
          %p221 = scmp.lt.s32.totalorder %s219, 0
          %p222 = pnand %p221, %p220
          %p223 = pneg %p222
          %s224 = sadd.s32 %s219, 2
          %s225 = scalar_select %p223, %s224, %s219
          %s226 = smul.u32 %s209, 8
          %s227 = sld [smem:[#allocation6 + %s226]]
          %s228 = sshra.s32 %s59, 7
          %s229 = sand.u32 %s59, 127
          %s230 = sadd.s32 %s228, %s227
          %s231 = scalar_lea.hbm %s1, %s230
          %s232 = smul.u32 %s225, 8
          %s233 = scalar_lea.vmem [#allocation2], %s232
          %s234 = scalar_lea.sflag [#allocation3], %s232
          // Predicated region
          $region53: #{tpu_custom_call.1} parent=51 // pred_check
            _
          $region54: #{tpu_custom_call.1} parent=51 // pred_check_branch
            %236 = sbr.rel target = $region56
          $region55: #{tpu_custom_call.1} parent=51 // pred_region
            %237 = sst [smem:[#allocation11]] [#allocation28]
            %238 = sst [smem:[#allocation12]] [#allocation27]
          $region56: #{tpu_custom_call.1} parent=51 // pred_fallthru
            _
          %240 = shalt.err (0)
          %s242 = sshll.u32 %s231, 4
          %s243 = int_to_ptr.hbm [resolvable:$true] %s242
          %s244 = sshll.u32 %s233, 4
          %s245 = int_to_ptr.vmem [resolvable:$true] %s244
          %247 = dma.hbm_to_vmem [thread:$0]  %s243, 16, %s245, %s234
          %s248 = sadd.s32 %s226, 1
          %s249 = sld [smem:[#allocation6 + %s248]]
          %s250 = sadd.s32 %s228, %s249
          %s251 = scalar_lea.hbm %s1, %s250
          %s252 = sadd.s32 1, %s232
          %s253 = scalar_lea.vmem [#allocation2], %s252
          %s254 = scalar_lea.sflag [#allocation3], %s252
          // Predicated region
          $region57: #{tpu_custom_call.1} parent=51 // pred_check
            _
          $region58: #{tpu_custom_call.1} parent=51 // pred_check_branch
            %256 = sbr.rel target = $region60
          $region59: #{tpu_custom_call.1} parent=51 // pred_region
            %257 = sst [smem:[#allocation11]] [#allocation30]
            %258 = sst [smem:[#allocation12]] [#allocation29]
          $region60: #{tpu_custom_call.1} parent=51 // pred_fallthru
            _
          %260 = shalt.err (0)
          %s262 = sshll.u32 %s251, 4
          %s263 = int_to_ptr.hbm [resolvable:$true] %s262
          %s264 = sshll.u32 %s253, 4
          %s265 = int_to_ptr.vmem [resolvable:$true] %s264
          %267 = dma.hbm_to_vmem [thread:$0]  %s263, 16, %s265, %s254
          %s268 = sadd.s32 %s226, 2
          %s269 = sld [smem:[#allocation6 + %s268]]
          %s270 = sadd.s32 %s228, %s269
          %s271 = scalar_lea.hbm %s1, %s270
          %s272 = sadd.s32 2, %s232
          %s273 = scalar_lea.vmem [#allocation2], %s272
          %s274 = scalar_lea.sflag [#allocation3], %s272
          // Predicated region
          $region61: #{tpu_custom_call.1} parent=51 // pred_check
            _
          $region62: #{tpu_custom_call.1} parent=51 // pred_check_branch
            %276 = sbr.rel target = $region64
          $region63: #{tpu_custom_call.1} parent=51 // pred_region
            %277 = sst [smem:[#allocation11]] [#allocation32]
            %278 = sst [smem:[#allocation12]] [#allocation31]
          $region64: #{tpu_custom_call.1} parent=51 // pred_fallthru
            _
          %280 = shalt.err (0)
          %s282 = sshll.u32 %s271, 4
          %s283 = int_to_ptr.hbm [resolvable:$true] %s282
          %s284 = sshll.u32 %s273, 4
          %s285 = int_to_ptr.vmem [resolvable:$true] %s284
          %287 = dma.hbm_to_vmem [thread:$0]  %s283, 16, %s285, %s274
          %s288 = sadd.s32 %s226, 3
          %s289 = sld [smem:[#allocation6 + %s288]]
          %s290 = sadd.s32 %s228, %s289
          %s291 = scalar_lea.hbm %s1, %s290
          %s292 = sadd.s32 3, %s232
          %s293 = scalar_lea.vmem [#allocation2], %s292
          %s294 = scalar_lea.sflag [#allocation3], %s292
          // Predicated region
          $region65: #{tpu_custom_call.1} parent=51 // pred_check
            _
          $region66: #{tpu_custom_call.1} parent=51 // pred_check_branch
            %296 = sbr.rel target = $region68
          $region67: #{tpu_custom_call.1} parent=51 // pred_region
            %297 = sst [smem:[#allocation11]] [#allocation34]
            %298 = sst [smem:[#allocation12]] [#allocation33]
          $region68: #{tpu_custom_call.1} parent=51 // pred_fallthru
            _
          %300 = shalt.err (0)
          %s302 = sshll.u32 %s291, 4
          %s303 = int_to_ptr.hbm [resolvable:$true] %s302
          %s304 = sshll.u32 %s293, 4
          %s305 = int_to_ptr.vmem [resolvable:$true] %s304
          %307 = dma.hbm_to_vmem [thread:$0]  %s303, 16, %s305, %s294
          %s308 = sadd.s32 %s226, 4
          %s309 = sld [smem:[#allocation6 + %s308]]
          %s310 = sadd.s32 %s228, %s309
          %s311 = scalar_lea.hbm %s1, %s310
          %s312 = sadd.s32 4, %s232
          %s313 = scalar_lea.vmem [#allocation2], %s312
          %s314 = scalar_lea.sflag [#allocation3], %s312
          // Predicated region
          $region69: #{tpu_custom_call.1} parent=51 // pred_check
            _
          $region70: #{tpu_custom_call.1} parent=51 // pred_check_branch
            %316 = sbr.rel target = $region72
          $region71: #{tpu_custom_call.1} parent=51 // pred_region
            %317 = sst [smem:[#allocation11]] [#allocation36]
            %318 = sst [smem:[#allocation12]] [#allocation35]
          $region72: #{tpu_custom_call.1} parent=51 // pred_fallthru
            _
          %320 = shalt.err (0)
          %s322 = sshll.u32 %s311, 4
          %s323 = int_to_ptr.hbm [resolvable:$true] %s322
          %s324 = sshll.u32 %s313, 4
          %s325 = int_to_ptr.vmem [resolvable:$true] %s324
          %327 = dma.hbm_to_vmem [thread:$0]  %s323, 16, %s325, %s314
          %s328 = sadd.s32 %s226, 5
          %s329 = sld [smem:[#allocation6 + %s328]]
          %s330 = sadd.s32 %s228, %s329
          %s331 = scalar_lea.hbm %s1, %s330
          %s332 = sadd.s32 5, %s232
          %s333 = scalar_lea.vmem [#allocation2], %s332
          %s334 = scalar_lea.sflag [#allocation3], %s332
          // Predicated region
          $region73: #{tpu_custom_call.1} parent=51 // pred_check
            _
          $region74: #{tpu_custom_call.1} parent=51 // pred_check_branch
            %336 = sbr.rel target = $region76
          $region75: #{tpu_custom_call.1} parent=51 // pred_region
            %337 = sst [smem:[#allocation11]] [#allocation38]
            %338 = sst [smem:[#allocation12]] [#allocation37]
          $region76: #{tpu_custom_call.1} parent=51 // pred_fallthru
            _
          %340 = shalt.err (0)
          %s342 = sshll.u32 %s331, 4
          %s343 = int_to_ptr.hbm [resolvable:$true] %s342
          %s344 = sshll.u32 %s333, 4
          %s345 = int_to_ptr.vmem [resolvable:$true] %s344
          %347 = dma.hbm_to_vmem [thread:$0]  %s343, 16, %s345, %s334
          %s348 = sadd.s32 %s226, 6
          %s349 = sld [smem:[#allocation6 + %s348]]
          %s350 = sadd.s32 %s228, %s349
          %s351 = scalar_lea.hbm %s1, %s350
          %s352 = sadd.s32 6, %s232
          %s353 = scalar_lea.vmem [#allocation2], %s352
          %s354 = scalar_lea.sflag [#allocation3], %s352
          // Predicated region
          $region77: #{tpu_custom_call.1} parent=51 // pred_check
            _
          $region78: #{tpu_custom_call.1} parent=51 // pred_check_branch
            %356 = sbr.rel target = $region80
          $region79: #{tpu_custom_call.1} parent=51 // pred_region
            %357 = sst [smem:[#allocation11]] [#allocation40]
            %358 = sst [smem:[#allocation12]] [#allocation39]
          $region80: #{tpu_custom_call.1} parent=51 // pred_fallthru
            _
          %360 = shalt.err (0)
          %s362 = sshll.u32 %s351, 4
          %s363 = int_to_ptr.hbm [resolvable:$true] %s362
          %s364 = sshll.u32 %s353, 4
          %s365 = int_to_ptr.vmem [resolvable:$true] %s364
          %367 = dma.hbm_to_vmem [thread:$0]  %s363, 16, %s365, %s354
          %s368 = sadd.s32 %s226, 7
          %s369 = sld [smem:[#allocation6 + %s368]]
          %s370 = sadd.s32 %s228, %s369
          %s371 = scalar_lea.hbm %s1, %s370
          %s372 = sadd.s32 7, %s232
          %s373 = scalar_lea.vmem [#allocation2], %s372
          %s374 = scalar_lea.sflag [#allocation3], %s372
          // Predicated region
          $region81: #{tpu_custom_call.1} parent=51 // pred_check
            _
          $region82: #{tpu_custom_call.1} parent=51 // pred_check_branch
            %376 = sbr.rel target = $region84
          $region83: #{tpu_custom_call.1} parent=51 // pred_region
            %377 = sst [smem:[#allocation11]] [#allocation42]
            %378 = sst [smem:[#allocation12]] [#allocation41]
          $region84: #{tpu_custom_call.1} parent=51 // pred_fallthru
            _
          %380 = shalt.err (0)
          %s382 = sshll.u32 %s371, 4
          %s383 = int_to_ptr.hbm [resolvable:$true] %s382
          %s384 = sshll.u32 %s373, 4
          %s385 = int_to_ptr.vmem [resolvable:$true] %s384
          %387 = dma.hbm_to_vmem [thread:$0]  %s383, 16, %s385, %s374
        $region52: #{tpu_custom_call.1} parent=11 // pred_fallthru
          _
        %p388 = scmp.lt.s32.totalorder %s24, 0
        %s389 = ssub.s32 0, %s24
        %s390 = scalar_select %p388, %s389, %s24
        %s391 = sand.u32 %s390, 1
        %s392 = ssub.s32 0, %s391
        %s393 = scalar_select %p388, %s392, %s391
        %p394 = scmp.ne.s32.totalorder %s393, 0
        %p395 = scmp.lt.s32.totalorder %s393, 0
        %p396 = pnand %p395, %p394
        %p397 = pneg %p396
        %s398 = sadd.s32 %s393, 2
        %s399 = scalar_select %p397, %s398, %s393
        %s400 = smul.u32 %s399, 8
        %s401 = scalar_lea.sflag [#allocation3], %s400
        %s402 = smul.u32 1, 1
        %s403 = sshll.u32 %s402, 4
        %404 = dma.done %s401, %s403
        %s405 = sadd.s32 1, %s400
        %s406 = scalar_lea.sflag [#allocation3], %s405
        %s407 = sshll.u32 %s402, 4
        %408 = dma.done %s406, %s407
        %s409 = sadd.s32 2, %s400
        %s410 = scalar_lea.sflag [#allocation3], %s409
        %s411 = sshll.u32 %s402, 4
        %412 = dma.done %s410, %s411
        %s413 = sadd.s32 3, %s400
        %s414 = scalar_lea.sflag [#allocation3], %s413
        %s415 = sshll.u32 %s402, 4
        %416 = dma.done %s414, %s415
        %s417 = sadd.s32 4, %s400
        %s418 = scalar_lea.sflag [#allocation3], %s417
        %s419 = sshll.u32 %s402, 4
        %420 = dma.done %s418, %s419
        %s421 = sadd.s32 5, %s400
        %s422 = scalar_lea.sflag [#allocation3], %s421
        %s423 = sshll.u32 %s402, 4
        %424 = dma.done %s422, %s423
        %s425 = sadd.s32 6, %s400
        %s426 = scalar_lea.sflag [#allocation3], %s425
        %s427 = sshll.u32 %s402, 4
        %428 = dma.done %s426, %s427
        %s429 = sadd.s32 7, %s400
        %s430 = scalar_lea.sflag [#allocation3], %s429
        %s431 = sshll.u32 %s402, 4
        %432 = dma.done %s430, %s431
        %s433 = scalar_lea.vmem [#allocation2], %s400
        %v434 = vld [vmem:[%s433] sm:$0xff]
        %v435 = vlaneseq
        %v436 = vshrl.u32 %v435, 7
        %s437 = smul.u32 %s24, 8
        %v438 = vstv %s437
        %v439 = vadd.s32 %v436, %v438
        %vm440 = vcmp.lt.s32.totalorder %v439, 18
        %v441 = vsel %vm440, 1, 0
        %vm442 = vcmp.eq.s32.totalorder %v441, 1
        %v443 = vsel %vm442, %v434, 0.0
        %v444 = vld [vmem:[#allocation4] sm:$0xff]
        %v445 = vadd.f32 %v444, %v443
        %446 = vst [vmem:[#allocation4] sm:$0xff] %v445
        %p447 = scmp.eq.s32.totalorder %s24, 2
        // Predicated region
        $region85: #{tpu_custom_call.1} parent=11 // pred_check
          %p448 = pneg %p447
        $region86: #{tpu_custom_call.1} parent=11 // pred_check_branch
          %450 = sbr.rel (%p448) target = $region88
        $region87: #{tpu_custom_call.1} parent=11 // pred_region
          %v451 = vld [vmem:[#allocation4] sm:$0xff]
          %v452 = vrot.slane %v451, 4
          %v453 = vadd.f32 %v451, %v452
          %v454 = vrot.slane %v453, 2
          %v455 = vadd.f32 %v453, %v454
          %v456 = vrot.slane %v455, 1
          %v457 = vadd.f32 %v455, %v456
          %458 = vst [vmem:[#allocation7] sm:$0x1] %v457
        $region88: #{tpu_custom_call.1} parent=11 // pred_fallthru
          _
        // Predicated region
        $region89: #{tpu_custom_call.1} parent=11 // pred_check
          %p459 = pneg %p42
        $region90: #{tpu_custom_call.1} parent=11 // pred_check_branch
          %461 = sbr.rel (%p459) target = $region92
        $region91: #{tpu_custom_call.1} parent=11 // pred_region
          %463 = vsyncadd [#allocation8], 0
          %s464 = scalar_lea.hbm %s2, %s23
          %s466 = sshll.u32 [#allocation7], 4
          %s467 = int_to_ptr.vmem [resolvable:$true] %s466
          %s468 = sshll.u32 %s464, 4
          %s469 = int_to_ptr.hbm [resolvable:$true] %s468
          %471 = dma.vmem_to_hbm [thread:$0]  %s467, 16, %s469, [#allocation8]
        $region92: #{tpu_custom_call.1} parent=11 // pred_fallthru
          _
        // Predicated region
        $region93: #{tpu_custom_call.1} parent=11 // pred_check
          %p472 = pneg %p42
        $region94: #{tpu_custom_call.1} parent=11 // pred_check_branch
          %474 = sbr.rel (%p472) target = $region96
        $region95: #{tpu_custom_call.1} parent=11 // pred_region
          %476 = dma.done [#allocation8], 16
        $region96: #{tpu_custom_call.1} parent=11 // pred_fallthru
          _
      $region12: #{tpu_custom_call.1} parent=5 // pred_fallthru
        _
      %p477 = scmp.le.s32.totalorder 1, %s17
      // Predicated region
      $region97: #{tpu_custom_call.1} parent=5 // pred_check
        %p478 = pneg %p477
      $region98: #{tpu_custom_call.1} parent=5 // pred_check_branch
        %480 = sbr.rel (%p478) target = $region100
      $region99: #{tpu_custom_call.1} parent=5 // pred_region
        %s481 = ssub.s32 %s17, 1
      $region100: #{tpu_custom_call.1} parent=5 // pred_fallthru
        _
    $region6: #{tpu_custom_call.1} parent=1 // loop_footer
      %s21 = sadd.s32 1, %s17
    $region7: #{tpu_custom_call.1} parent=1 // loop_footer_branch
      %16 = sbr.rel target = $region3
    $region8: #{tpu_custom_call.1} parent=1 // loop_exit
      _
    %482 = vsyncpa [#allocation8], 1
    %s483 = scalar_lea.sflag [#allocation8], 1
    %484 = vsyncpa %s483, 1
  %485 = vsyncmov [#allocation3]
  %s486 = vpop.sfrf %485
  %p487 = scmp.eq.s32.totalorder %s486, 0
  %p488 = pneg %p487
  %490 = shalt.err (%p488)
  %s491 = scalar_lea.sflag [#allocation3], 1
  %492 = vsyncmov %s491
  %s493 = vpop.sfrf %492
  %p494 = scmp.eq.s32.totalorder %s493, 0
  %p495 = pneg %p494
  %497 = shalt.err (%p495)
  %s498 = scalar_lea.sflag [#allocation3], 2
  %499 = vsyncmov %s498
  %s500 = vpop.sfrf %499
  %p501 = scmp.eq.s32.totalorder %s500, 0
  %p502 = pneg %p501
  %504 = shalt.err (%p502)
  %s505 = scalar_lea.sflag [#allocation3], 3
  %506 = vsyncmov %s505
  %s507 = vpop.sfrf %506
  %p508 = scmp.eq.s32.totalorder %s507, 0
  %p509 = pneg %p508
  %511 = shalt.err (%p509)
  %s512 = scalar_lea.sflag [#allocation3], 4
  %513 = vsyncmov %s512
  %s514 = vpop.sfrf %513
  %p515 = scmp.eq.s32.totalorder %s514, 0
  %p516 = pneg %p515
  %518 = shalt.err (%p516)
  %s519 = scalar_lea.sflag [#allocation3], 5
  %520 = vsyncmov %s519
  %s521 = vpop.sfrf %520
  %p522 = scmp.eq.s32.totalorder %s521, 0
  %p523 = pneg %p522
  %525 = shalt.err (%p523)
  %s526 = scalar_lea.sflag [#allocation3], 6
  %527 = vsyncmov %s526
  %s528 = vpop.sfrf %527
  %p529 = scmp.eq.s32.totalorder %s528, 0
  %p530 = pneg %p529
  %532 = shalt.err (%p530)
  %s533 = scalar_lea.sflag [#allocation3], 7
  %534 = vsyncmov %s533
  %s535 = vpop.sfrf %534
  %p536 = scmp.eq.s32.totalorder %s535, 0
  %p537 = pneg %p536
  %539 = shalt.err (%p537)
  %s540 = scalar_lea.sflag [#allocation3], 8
  %541 = vsyncmov %s540
  %s542 = vpop.sfrf %541
  %p543 = scmp.eq.s32.totalorder %s542, 0
  %p544 = pneg %p543
  %546 = shalt.err (%p544)
  %s547 = scalar_lea.sflag [#allocation3], 9
  %548 = vsyncmov %s547
  %s549 = vpop.sfrf %548
  %p550 = scmp.eq.s32.totalorder %s549, 0
  %p551 = pneg %p550
  %553 = shalt.err (%p551)
  %s554 = scalar_lea.sflag [#allocation3], 10
  %555 = vsyncmov %s554
  %s556 = vpop.sfrf %555
  %p557 = scmp.eq.s32.totalorder %s556, 0
  %p558 = pneg %p557
  %560 = shalt.err (%p558)
  %s561 = scalar_lea.sflag [#allocation3], 11
  %562 = vsyncmov %s561
  %s563 = vpop.sfrf %562
  %p564 = scmp.eq.s32.totalorder %s563, 0
  %p565 = pneg %p564
  %567 = shalt.err (%p565)
  %s568 = scalar_lea.sflag [#allocation3], 12
  %569 = vsyncmov %s568
  %s570 = vpop.sfrf %569
  %p571 = scmp.eq.s32.totalorder %s570, 0
  %p572 = pneg %p571
  %574 = shalt.err (%p572)
  %s575 = scalar_lea.sflag [#allocation3], 13
  %576 = vsyncmov %s575
  %s577 = vpop.sfrf %576
  %p578 = scmp.eq.s32.totalorder %s577, 0
  %p579 = pneg %p578
  %581 = shalt.err (%p579)
  %s582 = scalar_lea.sflag [#allocation3], 14
  %583 = vsyncmov %s582
  %s584 = vpop.sfrf %583
  %p585 = scmp.eq.s32.totalorder %s584, 0
  %p586 = pneg %p585
  %588 = shalt.err (%p586)
  %s589 = scalar_lea.sflag [#allocation3], 15
  %590 = vsyncmov %s589
  %s591 = vpop.sfrf %590
  %p592 = scmp.eq.s32.totalorder %s591, 0
  %p593 = pneg %p592
  %595 = shalt.err (%p593)

</llo_original>
